<compile_context>
chip_gen: v7x
topology: tpu7x:2x2x1
jax: 0.10.0
libtpu: 0.0.40
codegen_flags: <defaults>
</compile_context>

<pallas_src>
import functools
import math

import jax
import jax.numpy as jnp
from jax import lax
from jax.experimental import pallas as pl
from jax.experimental.pallas import tpu as pltpu


# ------------------------------ helpers ------------------------------

def _round_up(n, m):
    return ((n + m - 1) // m) * m


def _pick_tile(dim, target, align):
    """Largest `align`-multiple tile <= target that divides dim exactly, else full dim."""
    if dim <= target:
        return dim                       # full extent is always a legal block
    t = (target // align) * align
    while t >= align:
        if dim % t == 0:
            return t
        t -= align
    return dim                           # fallback: whole dim resident


_VMEM_LIMIT = 48 * 1024 * 1024           # safe on v5e/v6e (128 MiB) and v7x (64 MiB)


# ------------------------------ plain linear (qkv projection) ------------------------------

def _linear_kernel(x_ref, w_ref, b_ref, o_ref, acc_ref):
    k = pl.program_id(2)

    @pl.when(k == 0)
    def _():
        acc_ref[...] = jnp.zeros_like(acc_ref)

    # x: (tm, tk), w: (tk, tn) pre-transposed wrapper-side -> plain MXU matmul.
    acc_ref[...] += jnp.dot(x_ref[...], w_ref[...],
                            preferred_element_type=jnp.float32)

    @pl.when(k == pl.num_programs(2) - 1)
    def _():
        o_ref[...] = (acc_ref[...] + b_ref[...].astype(jnp.float32)).astype(o_ref.dtype)


def linear(x, weight, bias, *, tm=256, tn_target=512, tk_target=1024):
    """x @ weight.T + bias, weight given in PyTorch (n_out, n_in) layout."""
    orig_shape = x.shape
    n_in = orig_shape[-1]
    n_out = weight.shape[0]

    x2d = x.reshape(-1, n_in)
    M = x2d.shape[0]

    tm = min(tm, _round_up(M, 8))
    tn = _pick_tile(n_out, tn_target, 128)    # lane-dense (or full) output blocks
    tk = _pick_tile(n_in, tk_target, 128)
    grid = (pl.cdiv(M, tm), n_out // tn, n_in // tk)

    # One-time transpose so the kernel issues plain (k-major) matmuls with no
    # per-tile XLU transposes.  (Store weights pre-transposed to avoid even this.)
    w_t = weight.T
    b2d = bias.reshape(1, n_out)

    itemsize = jnp.dtype(x.dtype).itemsize
    cost = pl.CostEstimate(
        flops=2 * M * n_in * n_out,
        transcendentals=0,
        bytes_accessed=int(itemsize * (M * n_in + n_in * n_out + n_out + M * n_out)))

    out2d = pl.pallas_call(
        _linear_kernel,
        out_shape=jax.ShapeDtypeStruct((M, n_out), x.dtype),
        grid_spec=pltpu.PrefetchScalarGridSpec(
            num_scalar_prefetch=0,
            grid=grid,
            in_specs=[pl.BlockSpec((tm, tk), lambda i, j, k: (i, k)),
                      pl.BlockSpec((tk, tn), lambda i, j, k: (k, j)),
                      pl.BlockSpec((1, tn), lambda i, j, k: (0, j))],
            out_specs=pl.BlockSpec((tm, tn), lambda i, j, k: (i, j)),
            scratch_shapes=[pltpu.VMEM((tm, tn), jnp.float32)]),
        compiler_params=pltpu.CompilerParams(
            dimension_semantics=("parallel", "parallel", "arbitrary"),
            vmem_limit_bytes=_VMEM_LIMIT),
        cost_estimate=cost,
    )(x2d, w_t, b2d)

    return out2d.reshape(*orig_shape[:-1], n_out)


# ------------------------------ flash-style causal attention ------------------------------

def _flash_attn_kernel(q_ref, k_ref, v_ref, o_ref, m_sc, l_sc, acc_sc, *, scale):
    qi = pl.program_id(1)
    ki = pl.program_id(2)
    tq = q_ref.shape[1]
    tkv = k_ref.shape[1]

    @pl.when(ki == 0)
    def _():
        m_sc[...] = jnp.full_like(m_sc, -jnp.inf)
        l_sc[...] = jnp.zeros_like(l_sc)
        acc_sc[...] = jnp.zeros_like(acc_sc)

    # Skip kv blocks that lie entirely in the (causally masked) future.
    @pl.when(ki * tkv <= qi * tq + tq - 1)
    def _():
        # Keep native dtype for the MXU; fold the 1/sqrt(C) scale into q.
        q = q_ref[0] * scale
        k = k_ref[0]
        v = v_ref[0]

        s = lax.dot_general(q, k, dimension_numbers=(((1,), (1,)), ((), ())),
                            preferred_element_type=jnp.float32)        # (tq, tkv)
        row = qi * tq + lax.broadcasted_iota(jnp.int32, s.shape, 0)
        col = ki * tkv + lax.broadcasted_iota(jnp.int32, s.shape, 1)
        s = jnp.where(col <= row, s, -jnp.inf)                          # causal mask

        m_prev = m_sc[...]
        m_new = jnp.maximum(m_prev, jnp.max(s, axis=-1, keepdims=True))
        alpha = jnp.exp(m_prev - m_new)
        p = jnp.exp(s - m_new)
        l_sc[...] = alpha * l_sc[...] + jnp.sum(p, axis=-1, keepdims=True)
        acc_sc[...] = alpha * acc_sc[...] + jnp.dot(p.astype(v.dtype), v,
                                                    preferred_element_type=jnp.float32)
        m_sc[...] = m_new

    @pl.when(ki == pl.num_programs(2) - 1)
    def _():
        l = l_sc[...]
        r = pl.reciprocal(l, approx=True)     # EUP slot
        r = r * (2.0 - l * r)                 # one Newton step: full f32 accuracy
        o_ref[0] = (acc_sc[...] * r).astype(o_ref.dtype)


def causal_attention(qkv, n_embd, *, tq_target=256, tkv_target=512):
    """Causal softmax attention over the fused (B, T, 3C) qkv tensor."""
    B, T, _ = qkv.shape
    C = n_embd
    scale = 1.0 / math.sqrt(C)                # reference uses k.size(-1) == n_embd
    tq = _pick_tile(T, tq_target, 8)
    tkv = _pick_tile(T, tkv_target, 8)
    grid = (B, T // tq, T // tkv)

    if C % 128 == 0:
        # Lane-aligned column blocks: read Q/K/V straight out of qkv, no split,
        # no extra HBM round-trips.
        operands = (qkv, qkv, qkv)
        q_spec = pl.BlockSpec((1, tq, C), lambda b, qi, ki: (b, qi, 0))
        k_spec = pl.BlockSpec((1, tkv, C), lambda b, qi, ki: (b, ki, 1))
        v_spec = pl.BlockSpec((1, tkv, C), lambda b, qi, ki: (b, ki, 2))
    else:
        # Toy sizes (C < 128): fall back to an explicit split so block last dims
        # equal the full array dims (keeps Mosaic layout constraints trivially met).
        q, k, v = jnp.split(qkv, 3, axis=-1)
        operands = (q, k, v)
        q_spec = pl.BlockSpec((1, tq, C), lambda b, qi, ki: (b, qi, 0))
        k_spec = pl.BlockSpec((1, tkv, C), lambda b, qi, ki: (b, ki, 0))
        v_spec = pl.BlockSpec((1, tkv, C), lambda b, qi, ki: (b, ki, 0))

    return pl.pallas_call(
        functools.partial(_flash_attn_kernel, scale=scale),
        out_shape=jax.ShapeDtypeStruct((B, T, C), qkv.dtype),
        grid_spec=pltpu.PrefetchScalarGridSpec(
            num_scalar_prefetch=0,
            grid=grid,
            in_specs=[q_spec, k_spec, v_spec],
            out_specs=pl.BlockSpec((1, tq, C), lambda b, qi, ki: (b, qi, 0)),
            scratch_shapes=[pltpu.VMEM((tq, 1), jnp.float32),
                            pltpu.VMEM((tq, 1), jnp.float32),
                            pltpu.VMEM((tq, C), jnp.float32)]),
        compiler_params=pltpu.CompilerParams(
            dimension_semantics=("parallel", "parallel", "arbitrary")),
    )(*operands)


# ------------------------------ proj + residual + LayerNorm (fused) ------------------------------

def _proj_residual_ln_kernel(x_ref, w_ref, b_ref, r_ref, g_ref, be_ref,
                             o_ref, acc_ref, *, eps):
    k = pl.program_id(1)

    @pl.when(k == 0)
    def _():
        acc_ref[...] = jnp.zeros_like(acc_ref)

    acc_ref[...] += jnp.dot(x_ref[...], w_ref[...],
                            preferred_element_type=jnp.float32)

    @pl.when(k == pl.num_programs(1) - 1)
    def _():
        h = (acc_ref[...] + b_ref[...].astype(jnp.float32)
             + r_ref[...].astype(jnp.float32))
        mean = jnp.mean(h, axis=-1, keepdims=True)
        c = h - mean
        var = jnp.mean(c * c, axis=-1, keepdims=True)
        y = c * lax.rsqrt(var + eps) * g_ref[...].astype(jnp.float32) \
            + be_ref[...].astype(jnp.float32)
        o_ref[...] = y.astype(o_ref.dtype)


def proj_residual_layernorm(x, weight, bias, *, residual, gamma, beta,
                            eps=1e-5, tm=256, tk_target=1024):
    """LayerNorm(residual + x @ weight.T + bias) in a single kernel."""
    orig_shape = residual.shape
    n_in = weight.shape[1]
    n_out = weight.shape[0]

    x2d = x.reshape(-1, n_in)
    r2d = residual.reshape(-1, n_out)
    M = x2d.shape[0]

    tm = min(tm, _round_up(M, 8))
    tk = _pick_tile(n_in, tk_target, 128)
    grid = (pl.cdiv(M, tm), n_in // tk)       # full n_out resident -> LN fusable

    w_t = weight.T
    itemsize = jnp.dtype(residual.dtype).itemsize
    cost = pl.CostEstimate(
        flops=2 * M * n_in * n_out,
        transcendentals=0,
        bytes_accessed=int(itemsize * (M * n_in + n_in * n_out + 2 * M * n_out + 3 * n_out)))

    out2d = pl.pallas_call(
        functools.partial(_proj_residual_ln_kernel, eps=eps),
        out_shape=jax.ShapeDtypeStruct((M, n_out), residual.dtype),
        grid_spec=pltpu.PrefetchScalarGridSpec(
            num_scalar_prefetch=0,
            grid=grid,
            in_specs=[pl.BlockSpec((tm, tk), lambda i, k: (i, k)),
                      pl.BlockSpec((tk, n_out), lambda i, k: (k, 0)),
                      pl.BlockSpec((1, n_out), lambda i, k: (0, 0)),
                      pl.BlockSpec((tm, n_out), lambda i, k: (i, 0)),
                      pl.BlockSpec((1, n_out), lambda i, k: (0, 0)),
                      pl.BlockSpec((1, n_out), lambda i, k: (0, 0))],
            out_specs=pl.BlockSpec((tm, n_out), lambda i, k: (i, 0)),
            scratch_shapes=[pltpu.VMEM((tm, n_out), jnp.float32)]),
        compiler_params=pltpu.CompilerParams(
            dimension_semantics=("parallel", "arbitrary"),
            vmem_limit_bytes=_VMEM_LIMIT),
        cost_estimate=cost,
    )(x2d, w_t, bias.reshape(1, n_out), r2d,
      gamma.reshape(1, n_out), beta.reshape(1, n_out))

    return out2d.reshape(orig_shape)


# ------------------------------ fully fused FFN block ------------------------------

def _ffn_kernel(x_ref, wfc_ref, bfc_ref, wproj_ref, bproj_ref, g_ref, be_ref,
                o_ref, acc_ref, *, eps):
    j = pl.program_id(1)

    @pl.when(j == 0)
    def _():
        acc_ref[...] = jnp.zeros_like(acc_ref)

    # Hidden chunk (tm, th) = GELU(x @ Wfc_T[:, chunk] + b_fc[chunk]); never hits HBM.
    h = jnp.dot(x_ref[...], wfc_ref[...], preferred_element_type=jnp.float32)
    h = jax.nn.gelu(h + bfc_ref[...].astype(jnp.float32), approximate=False)
    # Back-project the chunk straight into the (tm, C) accumulator.
    acc_ref[...] += jnp.dot(h.astype(wproj_ref.dtype), wproj_ref[...],
                            preferred_element_type=jnp.float32)

    @pl.when(j == pl.num_programs(1) - 1)
    def _():
        y = (acc_ref[...] + bproj_ref[...].astype(jnp.float32)
             + x_ref[...].astype(jnp.float32))                    # residual = x tile
        mean = jnp.mean(y, axis=-1, keepdims=True)
        c = y - mean
        var = jnp.mean(c * c, axis=-1, keepdims=True)
        y = c * lax.rsqrt(var + eps) * g_ref[...].astype(jnp.float32) \
            + be_ref[...].astype(jnp.float32)
        o_ref[...] = y.astype(o_ref.dtype)


def ffn_block(x, w_fc, b_fc, w_proj, b_proj, *, gamma, beta,
              eps=1e-5, tm=256, th_target=512):
    """LayerNorm(x + GELU(x @ w_fc.T + b_fc) @ w_proj.T + b_proj) in one kernel."""
    orig_shape = x.shape
    C = orig_shape[-1]
    H = w_fc.shape[0]                     # 4*C

    x2d = x.reshape(-1, C)
    M = x2d.shape[0]
    tm = min(tm, _round_up(M, 8))
    th = _pick_tile(H, th_target, 128)
    grid = (pl.cdiv(M, tm), H // th)

    wfc_t = w_fc.T                        # (C, H)
    wproj_t = w_proj.T                    # (H, C)

    itemsize = jnp.dtype(x.dtype).itemsize
    cost = pl.CostEstimate(
        flops=4 * M * C * H,
        transcendentals=M * H,
        bytes_accessed=int(itemsize * (2 * M * C + 2 * C * H + H + 3 * C)))

    out2d = pl.pallas_call(
        functools.partial(_ffn_kernel, eps=eps),
        out_shape=jax.ShapeDtypeStruct((M, C), x.dtype),
        grid_spec=pltpu.PrefetchScalarGridSpec(
            num_scalar_prefetch=0,
            grid=grid,
            in_specs=[pl.BlockSpec((tm, C), lambda i, j: (i, 0)),
                      pl.BlockSpec((C, th), lambda i, j: (0, j)),
                      pl.BlockSpec((1, th), lambda i, j: (0, j)),
                      pl.BlockSpec((th, C), lambda i, j: (j, 0)),
                      pl.BlockSpec((1, C), lambda i, j: (0, 0)),
                      pl.BlockSpec((1, C), lambda i, j: (0, 0)),
                      pl.BlockSpec((1, C), lambda i, j: (0, 0))],
            out_specs=pl.BlockSpec((tm, C), lambda i, j: (i, 0)),
            scratch_shapes=[pltpu.VMEM((tm, C), jnp.float32)]),
        compiler_params=pltpu.CompilerParams(
            dimension_semantics=("parallel", "arbitrary"),
            vmem_limit_bytes=_VMEM_LIMIT),
        cost_estimate=cost,
    )(x2d, wfc_t, b_fc.reshape(1, H), wproj_t, b_proj.reshape(1, C),
      gamma.reshape(1, C), beta.reshape(1, C))

    return out2d.reshape(orig_shape)


# ------------------------------ full Block forward ------------------------------

def block_forward(x, p):
    """x -> attn-Skip -> LN1 -> ffwd-Skip -> LN2, matching Block.forward (eval mode)."""
    C = x.shape[-1]
    # --- Skip(MultiHeadAttention) + LN1 ---
    qkv = linear(x, p["w_rep"], p["b_rep"])                         # (B, T, 3C)
    attn = causal_attention(qkv, C)                                 # (B, T, C)
    x = proj_residual_layernorm(attn, p["w_attn_proj"], p["b_attn_proj"],
                                residual=x, gamma=p["ln1_g"], beta=p["ln1_b"])
    # --- Skip(FeedForward) + LN2, fully fused ---
    x = ffn_block(x, p["w_fc"], p["b_fc"], p["w_ffn_proj"], p["b_ffn_proj"],
                  gamma=p["ln2_g"], beta=p["ln2_b"])
    return x


# ------------------------------ pure-JAX reference ------------------------------

def _ln_ref(x, g, b, eps=1e-5):
    m = x.mean(-1, keepdims=True)
    v = ((x - m) ** 2).mean(-1, keepdims=True)
    return (x - m) * lax.rsqrt(v + eps) * g + b


def block_reference(x, p):
    B, T, C = x.shape
    qkv = x @ p["w_rep"].T + p["b_rep"]
    q, k, v = jnp.split(qkv, 3, axis=-1)
    s = jnp.einsum("btc,bsc->bts", q, k) / math.sqrt(C)
    causal = jnp.tril(jnp.ones((T, T), bool))
    s = jnp.where(causal[None], s, -jnp.inf)
    w = jax.nn.softmax(s, axis=-1)
    attn = jnp.einsum("bts,bsc->btc", w, v)
    x = x + attn @ p["w_attn_proj"].T + p["b_attn_proj"]
    x = _ln_ref(x, p["ln1_g"], p["ln1_b"])
    h = jax.nn.gelu(x @ p["w_fc"].T + p["b_fc"], approximate=False)
    x = x + h @ p["w_ffn_proj"].T + p["b_ffn_proj"]
    x = _ln_ref(x, p["ln2_g"], p["ln2_b"])
    return x


# ------------------------------ main ------------------------------

if __name__ == "__main__":
    B, T, n_embd, n_head = 2, 8, 32, 4   # block_size = T

    key = jax.random.PRNGKey(0)
    keys = jax.random.split(key, 9)

    def linear_init(kw, kb, n_out, n_in):
        bound = 1.0 / math.sqrt(n_in)
        w = jax.random.uniform(kw, (n_out, n_in), jnp.float32, -bound, bound)
        b = jax.random.uniform(kb, (n_out,), jnp.float32, -bound, bound)
        return w, b

    w_rep, b_rep = linear_init(keys[0], keys[1], 3 * n_embd, n_embd)
    w_attn_proj, b_attn_proj = linear_init(keys[2], keys[3], n_embd, n_embd)
    w_fc, b_fc = linear_init(keys[4], keys[5], 4 * n_embd, n_embd)
    w_ffn_proj, b_ffn_proj = linear_init(keys[6], keys[7], n_embd, 4 * n_embd)

    params = dict(
        w_rep=w_rep, b_rep=b_rep,
        w_attn_proj=w_attn_proj, b_attn_proj=b_attn_proj,
        w_fc=w_fc, b_fc=b_fc,
        w_ffn_proj=w_ffn_proj, b_ffn_proj=b_ffn_proj,
        ln1_g=jnp.ones((n_embd,), jnp.float32), ln1_b=jnp.zeros((n_embd,), jnp.float32),
        ln2_g=jnp.ones((n_embd,), jnp.float32), ln2_b=jnp.zeros((n_embd,), jnp.float32),
    )

    x = jax.random.normal(keys[8], (B, T, n_embd), jnp.float32)

    out = block_forward(x, params)
    out = jax.block_until_ready(out)

    ref = block_reference(x, params)
    assert out.shape == (B, T, n_embd)
    assert jnp.allclose(out, ref, atol=1e-3, rtol=1e-3), float(jnp.max(jnp.abs(out - ref)))

    print("KERNEL_OK")
</pallas_src>

<mosaic_0001>
module attributes {stable_mosaic.version = 11 : i64} {
  func.func @_linear_kernel(%arg0: i32, %arg1: i32, %arg2: i32, %arg3: memref<16x32xf32, #tpu.memory_space<vmem>>, %arg4: memref<32x96xf32, #tpu.memory_space<vmem>>, %arg5: memref<1x96xf32, #tpu.memory_space<vmem>>, %arg6: memref<16x96xf32, #tpu.memory_space<vmem>>, %arg7: memref<16x96xf32, #tpu.memory_space<vmem>>) attributes {dimension_semantics = [#tpu.dimension_semantics<parallel>, #tpu.dimension_semantics<parallel>, #tpu.dimension_semantics<arbitrary>], iteration_bounds = array<i64: 1, 1, 1>, scalar_prefetch = 0 : i64, scratch_operands = 1 : i64, tpu.core_type = #tpu.core_type<tc>, window_params = [{transform_indices = @transform_0, window_bounds = array<i64: 16, 32>}, {transform_indices = @transform_1, window_bounds = array<i64: 32, 96>}, {transform_indices = @transform_2, window_bounds = array<i64: 1, 96>}, {transform_indices = @transform_3, window_bounds = array<i64: 16, 96>}]} {
    %c0_i32 = arith.constant 0 : i32
    %0 = arith.cmpi eq, %arg2, %c0_i32 : i32
    %1 = arith.extui %0 : i1 to i32
    %c0_i32_0 = arith.constant 0 : i32
    %2 = arith.cmpi ne, %1, %c0_i32_0 : i32
    scf.if %2 {
      %cst_10 = arith.constant 0.000000e+00 : f32
      %12 = vector.broadcast %cst_10 : f32 to vector<16x96xf32>
      %c0_11 = arith.constant 0 : index
      %c0_12 = arith.constant 0 : index
      %13 = vector.load %arg7[%c0_11, %c0_12] : memref<16x96xf32, #tpu.memory_space<vmem>>, vector<16x96xf32>
      tpu.vector_store %arg7[%c0_11, %c0_12], %12 {strides = array<i32>} : memref<16x96xf32, #tpu.memory_space<vmem>>, vector<16x96xf32>,
    } else {
    }
    %c0 = arith.constant 0 : index
    %c0_1 = arith.constant 0 : index
    %3 = vector.load %arg7[%c0, %c0_1] : memref<16x96xf32, #tpu.memory_space<vmem>>, vector<16x96xf32>
    %c0_2 = arith.constant 0 : index
    %c0_3 = arith.constant 0 : index
    %4 = vector.load %arg3[%c0_2, %c0_3] : memref<16x32xf32, #tpu.memory_space<vmem>>, vector<16x32xf32>
    %c0_4 = arith.constant 0 : index
    %c0_5 = arith.constant 0 : index
    %5 = vector.load %arg4[%c0_4, %c0_5] : memref<32x96xf32, #tpu.memory_space<vmem>>, vector<32x96xf32>
    %cst = arith.constant dense<0.000000e+00> : vector<16x96xf32>
    %6 = tpu.matmul %4, %5, %cst {dimension_numbers = #tpu.dot_dimension_numbers<[1], [0], [0], [1], [0, 0, 1, 1], [], []>} : vector<16x32xf32>, vector<32x96xf32>, vector<16x96xf32> -> vector<16x96xf32>
    %7 = arith.addf %3, %6 : vector<16x96xf32>
    %c0_6 = arith.constant 0 : index
    %c0_7 = arith.constant 0 : index
    %8 = vector.load %arg7[%c0_6, %c0_7] : memref<16x96xf32, #tpu.memory_space<vmem>>, vector<16x96xf32>
    tpu.vector_store %arg7[%c0_6, %c0_7], %7 {strides = array<i32>} : memref<16x96xf32, #tpu.memory_space<vmem>>, vector<16x96xf32>,
    %c0_i32_8 = arith.constant 0 : i32
    %9 = arith.cmpi eq, %arg2, %c0_i32_8 : i32
    %10 = arith.extui %9 : i1 to i32
    %c0_i32_9 = arith.constant 0 : i32
    %11 = arith.cmpi ne, %10, %c0_i32_9 : i32
    scf.if %11 {
      %c0_10 = arith.constant 0 : index
      %c0_11 = arith.constant 0 : index
      %12 = vector.load %arg7[%c0_10, %c0_11] : memref<16x96xf32, #tpu.memory_space<vmem>>, vector<16x96xf32>
      %c0_12 = arith.constant 0 : index
      %c0_13 = arith.constant 0 : index
      %13 = vector.load %arg5[%c0_12, %c0_13] : memref<1x96xf32, #tpu.memory_space<vmem>>, vector<1x96xf32>
      %14 = vector.broadcast %13 : vector<1x96xf32> to vector<16x96xf32>
      %15 = arith.addf %12, %14 : vector<16x96xf32>
      %c0_14 = arith.constant 0 : index
      %c0_15 = arith.constant 0 : index
      %16 = vector.load %arg6[%c0_14, %c0_15] : memref<16x96xf32, #tpu.memory_space<vmem>>, vector<16x96xf32>
      tpu.vector_store %arg6[%c0_14, %c0_15], %15 {strides = array<i32>} : memref<16x96xf32, #tpu.memory_space<vmem>>, vector<16x96xf32>,
    } else {
    }
    return
  }
  func.func @transform_0(%arg0: i32, %arg1: i32, %arg2: i32) -> (i32, i32) {
    %c0_i32 = arith.constant 0 : i32
    return %arg0, %arg2 : i32, i32
  }
  func.func @transform_1(%arg0: i32, %arg1: i32, %arg2: i32) -> (i32, i32) {
    %c0_i32 = arith.constant 0 : i32
    return %arg2, %arg1 : i32, i32
  }
  func.func @transform_2(%arg0: i32, %arg1: i32, %arg2: i32) -> (i32, i32) {
    %c0_i32 = arith.constant 0 : i32
    %c0_i32_0 = arith.constant 0 : i32
    return %c0_i32, %arg1 : i32, i32
  }
  func.func @transform_3(%arg0: i32, %arg1: i32, %arg2: i32) -> (i32, i32) {
    %c0_i32 = arith.constant 0 : i32
    return %arg0, %arg1 : i32, i32
  }
}

</mosaic_0001>

<llo_original>
// kernel: tpu_custom_call.1
$region0: #{tpu_custom_call.1}
  #allocation0 [shape = 'u32[]', space=smem, size = 0x4, offset = 0x4, fixed_abs, tag = 'smem constant byte address 0x4 - core index']
  #allocation1 [shape = 'u32[144,128]{1,0:T(1,128)}', space=vmem, size = 0x12000, scoped, tag = 'internal scratch']
  #allocation2 [shape = 'f32[16,96]{1,0:T(8,128)}', space=vmem, size = 0x2000, scoped, tag = 'scratch operand']
  %s0 = inlined_call_operand.hbm [shape: f32[16,32], index: 0, kind: input, shape index: {}]
  %s1 = inlined_call_operand.hbm [shape: f32[32,96], index: 1, kind: input, shape index: {}]
  %s2 = inlined_call_operand.vmem [shape: f32[1,96], index: 2, kind: input, shape index: {}]
  %s3 = inlined_call_operand.hbm [shape: f32[16,96], index: 3, kind: output, shape index: {}]
  %s4 = sld [smem:[#allocation0]]
  $region38: #{tpu_custom_call.1} parent=0
    _
  %s6 = ssub.s32 1, %s4
  %s7 = scalar_select 0, %s6, %s4
  $region1: #{tpu_custom_call.1} parent=0
    #allocation3 [shape = 'u8[8192]{0}', space=vmem, size = 0x2000, scoped, tag = 'input window, operand 0, single buffered']
    #allocation4 [shape = 's32[1]{0}', space=sflag, size = 0x4, scoped, tag = 'scoped memory for tpu_custom_call.1']
    #allocation5 [shape = 's32[1]{0}', space=sflag, size = 0x4, scoped, tag = 'scoped memory for tpu_custom_call.1']
    #allocation6 [shape = 'u8[16384]{0}', space=vmem, size = 0x4000, scoped, tag = 'input window, operand 1, single buffered']
    #allocation7 [shape = 's32[1]{0}', space=sflag, size = 0x4, scoped, tag = 'scoped memory for tpu_custom_call.1']
    #allocation8 [shape = 'u8[8192]{0}', space=vmem, size = 0x2000, scoped, tag = 'output window, operand 0, single buffered']
    %8 = vsyncpa [#allocation4], 0
    %9 = vsyncpa [#allocation7], 0
    %10 = vsyncpa [#allocation5], 0
    // Predicated region
    $region2: #{tpu_custom_call.1} parent=1 // pred_check
      _
    $region3: #{tpu_custom_call.1} parent=1 // pred_check_branch
      %12 = sbr.rel (0) target = $region5
    $region4: #{tpu_custom_call.1} parent=1 // pred_region
      %s14 = ssub.s32 256, 256
      %15 = vsyncadd [#allocation4], %s14
      %s16 = sshll.u32 [#allocation3], 4
      %s17 = int_to_ptr.vmem [resolvable:$true] %s16
      %22 = dma.hbm_to_vmem [thread:$0]  %s0, 256, %s17, [#allocation4], 128, 128, 8
    $region5: #{tpu_custom_call.1} parent=1 // pred_fallthru
      _
    // Predicated region
    $region6: #{tpu_custom_call.1} parent=1 // pred_check
      _
    $region7: #{tpu_custom_call.1} parent=1 // pred_check_branch
      %24 = sbr.rel (0) target = $region9
    $region8: #{tpu_custom_call.1} parent=1 // pred_region
      %s26 = ssub.s32 512, 512
      %27 = vsyncadd [#allocation7], %s26
      %s28 = sshll.u32 [#allocation6], 4
      %s29 = int_to_ptr.vmem [resolvable:$true] %s28
      %34 = dma.hbm_to_vmem [thread:$0]  %s1, 512, %s29, [#allocation7], 128, 128, 8
    $region9: #{tpu_custom_call.1} parent=1 // pred_fallthru
      _
    // Predicated region
    $region10: #{tpu_custom_call.1} parent=1 // pred_check
      _
    $region11: #{tpu_custom_call.1} parent=1 // pred_check_branch
      %36 = sbr.rel (0) target = $region13
    $region12: #{tpu_custom_call.1} parent=1 // pred_region
      _
    $region13: #{tpu_custom_call.1} parent=1 // pred_fallthru
      _
    // Predicated region
    $region14: #{tpu_custom_call.1} parent=1 // pred_check
      _
    $region15: #{tpu_custom_call.1} parent=1 // pred_check_branch
      %38 = sbr.rel (0) target = $region17
    $region16: #{tpu_custom_call.1} parent=1 // pred_region
      %39 = dma.done [#allocation4], 256
    $region17: #{tpu_custom_call.1} parent=1 // pred_fallthru
      _
    // Predicated region
    $region18: #{tpu_custom_call.1} parent=1 // pred_check
      _
    $region19: #{tpu_custom_call.1} parent=1 // pred_check_branch
      %41 = sbr.rel (0) target = $region21
    $region20: #{tpu_custom_call.1} parent=1 // pred_region
      %42 = dma.done [#allocation7], 512
    $region21: #{tpu_custom_call.1} parent=1 // pred_fallthru
      _
    %p43 = scmp.eq.s32.totalorder 0, 0
    // Predicated region
    $region22: #{tpu_custom_call.1} parent=1 // pred_check
      %p44 = pneg %p43
    $region23: #{tpu_custom_call.1} parent=1 // pred_check_branch
      %46 = sbr.rel (%p44) target = $region25
    $region24: #{tpu_custom_call.1} parent=1 // pred_region
      %vm47 = vcmask 785408
      %48 = vst.msk [vmem:[#allocation2] sm:$0xff] %vm47, 0.0
      %49 = vst.msk [vmem:[#allocation2 + $0x8] sm:$0xff] %vm47, 0.0
    $region25: #{tpu_custom_call.1} parent=1 // pred_fallthru
      _
    %v50 = vld [vmem:[#allocation2] sm:$0xff]
    %v51 = vld [vmem:[#allocation2 + $0x8] sm:$0xff]
    %v52 = vld [vmem:[#allocation3] sm:$0xff]
    %v53 = vld [vmem:[#allocation3 + $0x8] sm:$0xff]
    %v54 = vld [vmem:[#allocation6] sm:$0xff]
    %v55 = vld [vmem:[#allocation6 + $0x8] sm:$0xff]
    %v56 = vld [vmem:[#allocation6 + $0x10] sm:$0xff]
    %v57 = vld [vmem:[#allocation6 + $0x18] sm:$0xff]
    %vm58 = vcmask 261120
    %v60 = vsel %vm58, %v52, 0
    %v63 = vsel %vm58, %v53, 0
    %65 = vmatprep.subr.mxu0 0.0
    %66 = vmatpush1.msra.mxu0 %v54
    %67 = vmatprep.subr.mxu0 0.0
    %68 = vmatpush1.msra.mxu0 %v55
    %69 = vmatprep.subr.mxu0 0.0
    %70 = vmatpush1.msra.mxu0 %v56
    %71 = vmatprep.subr.mxu0 0.0
    %72 = vmatpush1.msra.mxu0 %v57
    %73 = vmatprep.subr.mxu0 0.0
    %74 = vmatpush1.msra.mxu0 0.0
    %75 = vmatprep.subr.mxu0 0.0
    %76 = vmatpush1.msra.mxu0 0.0
    %77 = vmatprep.subr.mxu0 0.0
    %78 = vmatpush1.msra.mxu0 0.0
    %79 = vmatprep.subr.mxu0 0.0
    %80 = vmatpush1.msra.mxu0 0.0
    %81 = vmatprep.subr.mxu0 0.0
    %82 = vmatpush1.msra.mxu0 0.0
    %83 = vmatprep.subr.mxu0 0.0
    %84 = vmatpush1.msra.mxu0 0.0
    %85 = vmatprep.subr.mxu0 0.0
    %86 = vmatpush1.msra.mxu0 0.0
    %87 = vmatprep.subr.mxu0 0.0
    %88 = vmatpush1.msra.mxu0 0.0
    %89 = vmatprep.subr.mxu0 0.0
    %90 = vmatpush1.msra.mxu0 0.0
    %91 = vmatprep.subr.mxu0 0.0
    %92 = vmatpush1.msra.mxu0 0.0
    %93 = vmatprep.subr.mxu0 0.0
    %94 = vmatpush1.msra.mxu0 0.0
    %95 = vmatprep.subr.mxu0 0.0
    %96 = vmatpush1.msra.mxu0 0.0
    %97 = vmatprep.subr.mxu0 0.0
    %98 = vmatpush1.msra.mxu0 0.0
    %99 = vmatprep.subr.mxu0 0.0
    %100 = vmatpush1.msra.mxu0 0.0
    %101 = vmatprep.subr.mxu0 0.0
    %102 = vmatpush1.msra.mxu0 0.0
    %103 = vmatprep.subr.mxu0 0.0
    %104 = vmatpush1.msra.mxu0 0.0
    %105 = vmatprep.subr.mxu0 0.0
    %106 = vmatpush1.msra.mxu0 0.0
    %107 = vmatprep.subr.mxu0 0.0
    %108 = vmatpush1.msra.mxu0 0.0
    %109 = vmatprep.subr.mxu0 0.0
    %110 = vmatpush1.msra.mxu0 0.0
    %111 = vmatprep.subr.mxu0 0.0
    %112 = vmatpush1.msra.mxu0 0.0
    %113 = vmatprep.subr.mxu0 0.0
    %114 = vmatpush1.msra.mxu0 0.0
    %115 = vmatprep.subr.mxu0 0.0
    %116 = vmatpush1.msra.mxu0 0.0
    %117 = vmatprep.subr.mxu0 0.0
    %118 = vmatpush1.msra.mxu0 0.0
    %119 = vmatprep.subr.mxu0 0.0
    %120 = vmatpush1.msra.mxu0 0.0
    %121 = vmatprep.subr.mxu0 0.0
    %122 = vmatpush1.msra.mxu0 0.0
    %123 = vmatprep.subr.mxu0 0.0
    %124 = vmatpush1.msra.mxu0 0.0
    %125 = vmatprep.subr.mxu0 0.0
    %126 = vmatpush1.msra.mxu0 0.0
    %127 = vmatprep.subr.mxu0 0.0
    %128 = vmatpush1.msra.mxu0 0.0
    %129 = vmatprep.mubr.f32.mxu0 0.0
    %130 = vmatmul.mubr.f32.gmra.mrb[0].mxu0 %v60
    %v131 = vpop.f32.mrb[0].mxu0
    %v132 = vadd.f32 0.0, %v131
    %v133 = vpop.f32.mrb[0].mxu0
    %134 = vmatprep.mubr.f32.mxu0 0.0
    %135 = vmatmul.mubr.f32.gmra.mrb[0].mxu0 %v63
    %v136 = vpop.f32.mrb[0].mxu0
    %v137 = vadd.f32 0.0, %v136
    %v138 = vpop.f32.mrb[0].mxu0
    %139 = vdwg.mxu0
    %v140 = vadd.f32 %v50, %v132
    %v141 = vadd.f32 %v51, %v137
    %vm142 = vcmask 785408
    %143 = vst.msk [vmem:[#allocation2] sm:$0xff] %vm142, %v140
    %144 = vst.msk [vmem:[#allocation2 + $0x8] sm:$0xff] %vm142, %v141
    // Predicated region
    $region26: #{tpu_custom_call.1} parent=1 // pred_check
      %p145 = pneg %p43
    $region27: #{tpu_custom_call.1} parent=1 // pred_check_branch
      %147 = sbr.rel (%p145) target = $region29
    $region28: #{tpu_custom_call.1} parent=1 // pred_region
      %v148 = vld [vmem:[#allocation2] sm:$0xff]
      %v149 = vld [vmem:[#allocation2 + $0x8] sm:$0xff]
      %v150 = vld [vmem:[%s2] sm:$0x1]
      %v152 = vlaneseq
      %v153 = vshrl.u32 %v152, 7
      %v154 = vsub.s32 0, %v153
      %v155 = vrot.slane %v150, %v154
      %v157 = vadd.f32 %v148, %v155
      %v158 = vadd.f32 %v149, %v155
      %159 = vst.msk [vmem:[#allocation8] sm:$0xff] %vm142, %v157
      %160 = vst.msk [vmem:[#allocation8 + $0x8] sm:$0xff] %vm142, %v158
    $region29: #{tpu_custom_call.1} parent=1 // pred_fallthru
      _
    // Predicated region
    $region30: #{tpu_custom_call.1} parent=1 // pred_check
      _
    $region31: #{tpu_custom_call.1} parent=1 // pred_check_branch
      %162 = sbr.rel (0) target = $region33
    $region32: #{tpu_custom_call.1} parent=1 // pred_region
      %s164 = ssub.s32 256, 256
      %165 = vsyncadd [#allocation5], %s164
      %s166 = sshll.u32 [#allocation8], 4
      %s167 = int_to_ptr.vmem [resolvable:$true] %s166
      %172 = dma.vmem_to_hbm [thread:$0]  %s167, 256, %s3, [#allocation5], 128, 128, 8
    $region33: #{tpu_custom_call.1} parent=1 // pred_fallthru
      _
    // Predicated region
    $region34: #{tpu_custom_call.1} parent=1 // pred_check
      _
    $region35: #{tpu_custom_call.1} parent=1 // pred_check_branch
      %174 = sbr.rel (0) target = $region37
    $region36: #{tpu_custom_call.1} parent=1 // pred_region
      %175 = dma.done [#allocation5], 256
    $region37: #{tpu_custom_call.1} parent=1 // pred_fallthru
      _
    %176 = vsyncpa [#allocation4], 1
    %177 = vsyncpa [#allocation7], 1
    %178 = vsyncpa [#allocation5], 1

</llo_original>
